<compile_context>
chip_gen: v6e
topology: v6e:2x2x1
jax: 0.10.0
libtpu: 0.0.40
codegen_flags: <defaults>
</compile_context>

<pallas_src>
import itertools
import numpy as np

import jax
import jax.numpy as jnp
from jax import lax
from jax.experimental import pallas as pl
from jax.experimental.pallas import tpu as pltpu


_TILE_Q_MAX = 256   # query rows per grid step (fits v5e's 16 MiB scoped-VMEM default with margin)
_SUB_Q_MAX = 64     # rows per in-kernel elementwise sub-block (keeps GIoU temps in vregs)
_EPS = 1e-12        # protects 0/0 from zero-padded query rows / target columns


def _round_up(x, m):
    return (x + m - 1) // m * m


def _pick_sub_q(tile_q):
    """Largest sub-block size (<= _SUB_Q_MAX, multiple of 8) dividing tile_q."""
    for s in (_SUB_Q_MAX, 32, 16, 8):
        if tile_q % s == 0:
            return s
    return tile_q


def _make_cost_kernel(class_w, bbox_w, giou_w, tile_q, sub_q):
    """Kernel computing one (tile_q, Mp) tile of the DETR matching cost for one image."""
    n_sub = tile_q // sub_q

    def kernel(logits_ref, pbox_ref, onehot_t_ref, tbox_t_ref, out_ref):
        # ---- classification cost: -softmax(logits)[:, tgt_ids] via one-hot MXU matmul.
        # Normalization is folded through the matmul (per-row reciprocal on the EUP instead
        # of a (Tq, Cp)-wide divide).  The result goes straight to out_ref so no full-tile
        # f32 temporary stays live across the elementwise section below.
        logits = logits_ref[...]                                   # (Tq, Cp) f32
        m = jnp.max(logits, axis=-1, keepdims=True)
        e = jnp.exp(logits - m)
        inv_den = pl.reciprocal(jnp.sum(e, axis=-1, keepdims=True), approx=True)   # (Tq, 1)
        class_cost = jnp.dot(e.astype(jnp.bfloat16), onehot_t_ref[...],
                             preferred_element_type=jnp.float32) * inv_den         # (Tq, Mp)
        out_ref[...] = (-class_w) * class_cost

        # ---- target-side quantities hoisted out of the row sub-block loop ((1, Mp) each) ----
        tb = tbox_t_ref[...]                                       # (4, Mp) cxcywh^T, f32
        tcx, tcy, tw, th = tb[0:1, :], tb[1:2, :], tb[2:3, :], tb[3:4, :]
        tx0, ty0 = tcx - 0.5 * tw, tcy - 0.5 * th
        tx1, ty1 = tcx + 0.5 * tw, tcy + 0.5 * th
        area_t = (tx1 - tx0) * (ty1 - ty0)

        # ---- L1 + GIoU over sub_q-row blocks: every (sub_q, Mp) intermediate stays in vregs,
        # accumulating directly into out_ref (single lane-dense read-modify-write per block).
        def body(s, carry):
            r = pl.multiple_of(s * sub_q, sub_q)
            pb = pbox_ref[pl.ds(r, sub_q), :]                      # (sub_q, 4) cxcywh
            pcx, pcy, pw, ph = pb[:, 0:1], pb[:, 1:2], pb[:, 2:3], pb[:, 3:4]

            # L1 cdist, coordinate-by-coordinate.
            bbox_cost = (jnp.abs(pcx - tcx) + jnp.abs(pcy - tcy)
                         + jnp.abs(pw - tw) + jnp.abs(ph - th))

            # cxcywh -> xyxy.
            px0, py0 = pcx - 0.5 * pw, pcy - 0.5 * ph
            px1, py1 = pcx + 0.5 * pw, pcy + 0.5 * ph
            area_p = (px1 - px0) * (py1 - py0)

            # Generalized IoU; divides are eps-protected approx reciprocals (EUP slot).
            inter = (jnp.maximum(jnp.minimum(px1, tx1) - jnp.maximum(px0, tx0), 0.0) *
                     jnp.maximum(jnp.minimum(py1, ty1) - jnp.maximum(py0, ty0), 0.0))
            union = area_p + area_t - inter
            iou = inter * pl.reciprocal(jnp.maximum(union, _EPS), approx=True)

            enc = (jnp.maximum(jnp.maximum(px1, tx1) - jnp.minimum(px0, tx0), 0.0) *
                   jnp.maximum(jnp.maximum(py1, ty1) - jnp.minimum(py0, ty0), 0.0))
            # -giou = (enc - union)/enc - iou
            neg_giou = (enc - union) * pl.reciprocal(jnp.maximum(enc, _EPS), approx=True) - iou

            out_ref[pl.ds(r, sub_q), :] = (out_ref[pl.ds(r, sub_q), :]
                                           + bbox_w * bbox_cost + giou_w * neg_giou)
            return carry

        lax.fori_loop(0, n_sub, body, 0, unroll=True)

    return kernel


class HungarianMatcher:
    def __init__(self, class_cost, bbox_cost, giou_cost):
        self.class_cost = float(class_cost)
        self.bbox_cost = float(bbox_cost)
        self.giou_cost = float(giou_cost)

    # ---------- padding / tiling ----------

    @staticmethod
    def _q_tiling(num_query, batch_size):
        """Return (Qp, tile_q): padded query count and per-step tile (tile_q divides Qp)."""
        q = max(int(num_query), 1)
        qr = _round_up(q, 8)
        if qr <= _TILE_Q_MAX:
            # B == 1 would collapse the grid to a single step; split into 2 query tiles so
            # both v7x TensorCores get work ("parallel" semantics need >= 2 grid steps).
            if batch_size == 1 and qr >= 16:
                tile_q = _round_up((qr + 1) // 2, 8)
                return 2 * tile_q, tile_q
            return qr, qr
        # Large Q: round to a multiple of 128 (NOT of TILE_Q_MAX — avoids up-to-2x over-pad)
        # and pick a divisor tile size.
        Qp = _round_up(q, 128)
        tile_q = _TILE_Q_MAX if Qp % _TILE_Q_MAX == 0 else 128
        return Qp, tile_q

    def _pad_inputs(self, x, y):
        """Pad inputs to per-image TPU-friendly tiles (host numpy + one device_put each)."""
        logits = np.asarray(x['class'], dtype=np.float32)          # (B, Q, C)
        pbox = np.asarray(x['bbox'], dtype=np.float32)             # (B, Q, 4)
        B, Q, C = logits.shape
        sizes = [int(np.asarray(t['boxes']).shape[0]) for t in y]
        Qp, tile_q = self._q_tiling(Q, B)
        Cp = _round_up(C, 128)
        Mp = _round_up(max(max(sizes) if sizes else 1, 1), 128)

        # Padded class logits get -1e30 so the softmax denominator ignores them; padded
        # query rows / target columns are zeros and are sliced off after the kernel.
        logits_p = np.full((B, Qp, Cp), -1e30, np.float32)
        logits_p[:, :Q, :C] = logits
        pbox_p = np.zeros((B, Qp, 4), np.float32)
        pbox_p[:, :Q, :] = pbox
        onehot_t = np.zeros((B, Cp, Mp), np.float32)                # exact in bf16
        tbox_t = np.zeros((B, 4, Mp), np.float32)
        for i, t in enumerate(y):
            mi = sizes[i]
            if mi == 0:
                continue
            labels = np.asarray(t['labels'], dtype=np.int64)
            onehot_t[i, labels, np.arange(mi)] = 1.0                # (C, mi) one-hot, transposed
            tbox_t[i, :, :mi] = np.asarray(t['boxes'], dtype=np.float32).T

        return (jnp.asarray(logits_p), jnp.asarray(pbox_p),
                jnp.asarray(onehot_t, dtype=jnp.bfloat16), jnp.asarray(tbox_t),
                tile_q, sizes)

    # ---------- Pallas cost matrix ----------

    def cost_matrix(self, logits_p, pbox_p, onehot_t, tbox_t, tile_q):
        """(B, Qp, Cp), (B, Qp, 4), (B, Cp, Mp) bf16, (B, 4, Mp) -> padded cost (B, Qp, Mp)."""
        B, Qp, Cp = logits_p.shape
        Mp = tbox_t.shape[-1]
        n_q_tiles = Qp // tile_q
        sub_q = _pick_sub_q(tile_q)

        kernel = _make_cost_kernel(self.class_cost, self.bbox_cost, self.giou_cost,
                                   tile_q, sub_q)
        cost_estimate = pl.CostEstimate(
            flops=int(2 * B * Qp * Cp * Mp + 40 * B * Qp * Mp),
            transcendentals=int(B * Qp * (Cp + 2 * Mp + 1)),
            bytes_accessed=int(B * (4 * Qp * Cp + 16 * Qp + 2 * Cp * Mp + 16 * Mp
                                    + 4 * Qp * Mp)),
        )

        # Explicit scoped-VMEM budget: double-buffered tiles + headroom, clamped to a value
        # that is valid on every generation (v5e 16 MiB default, v7x 32 MiB scoped / 64 phys).
        need = 2 * (tile_q * Cp * 4 + tile_q * 16 + Cp * Mp * 2 + 4 * Mp * 4 + tile_q * Mp * 4)
        vmem_limit = int(min(48 * 1024 * 1024, max(16 * 1024 * 1024, 4 * need)))

        # TODO(synk): for very large class counts (Cp in the thousands) add a Cp grid axis
        # marked "arbitrary" with an online-softmax accumulator so the logits block becomes
        # (tile_q, tile_c); not needed at typical DETR sizes (Cp == 128).
        return pl.pallas_call(
            kernel,
            out_shape=jax.ShapeDtypeStruct((B, Qp, Mp), jnp.float32),
            grid_spec=pltpu.PrefetchScalarGridSpec(
                num_scalar_prefetch=0,
                grid=(B, n_q_tiles),
                in_specs=[
                    # Row tiles of logits / predicted boxes (pipelined, double-buffered).
                    pl.BlockSpec((None, tile_q, Cp), lambda b, q: (b, q, 0)),
                    pl.BlockSpec((None, tile_q, 4), lambda b, q: (b, q, 0)),
                    # Per-image targets: grid-invariant along the query-tile axis (no re-DMA).
                    pl.BlockSpec((None, Cp, Mp), lambda b, q: (b, 0, 0)),
                    pl.BlockSpec((None, 4, Mp), lambda b, q: (b, 0, 0)),
                ],
                out_specs=pl.BlockSpec((None, tile_q, Mp), lambda b, q: (b, q, 0)),
            ),
            compiler_params=pltpu.CompilerParams(
                dimension_semantics=("parallel", "parallel"),
                vmem_limit_bytes=vmem_limit),
            cost_estimate=cost_estimate,
        )(logits_p, pbox_p, onehot_t, tbox_t)

    # ---------- full forward (kernel + host assignment) ----------

    def forward(self, x, y):
        batch_size, num_query = x['class'].shape[:2]
        logits_p, pbox_p, onehot_t, tbox_t, tile_q, sizes = self._pad_inputs(x, y)
        cost = self.cost_matrix(logits_p, pbox_p, onehot_t, tbox_t, tile_q)
        # Slice padding off on device before the D2H copy (transfer only (B, Q, max_m)).
        max_m = max(max(sizes) if sizes else 1, 1)
        cost = cost[:, :num_query, :max_m]
        cost = np.asarray(jax.block_until_ready(cost))             # (B, Q, max_m)

        # TODO(synk): linear_sum_assignment is a sequential, data-dependent algorithm with no
        # clean Pallas equivalent; solved exactly on host (scipy if available, else brute force).
        out = []
        for i in range(batch_size):
            ci = cost[i, :, :sizes[i]]
            ri, cj = _linear_sum_assignment(ci)
            out.append((np.asarray(ri, dtype=np.int64), np.asarray(cj, dtype=np.int64)))
        return out


def _linear_sum_assignment(cost):
    """Hungarian assignment on host: scipy when available, exact brute force otherwise."""
    try:
        from scipy.optimize import linear_sum_assignment as _scipy_lsa
        r, c = _scipy_lsa(cost)
        return np.asarray(r), np.asarray(c)
    except ImportError:
        pass
    n_rows, n_cols = cost.shape
    assert n_cols <= n_rows
    if n_cols == 0:
        return np.zeros((0,), np.int64), np.zeros((0,), np.int64)
    best_rows, best_cost = None, np.inf
    cols = list(range(n_cols))
    for rows in itertools.permutations(range(n_rows), n_cols):
        c = cost[list(rows), cols].sum()
        if c < best_cost:
            best_cost, best_rows = c, rows
    row_ind = np.array(best_rows)
    col_ind = np.arange(n_cols)
    order = np.argsort(row_ind)
    return row_ind[order], col_ind[order]


def _reference_cost(logits, pbox, tgt_ids, tbox, cw, bw, gw):
    """Pure-JAX reference mirroring the PyTorch forward (for verification)."""
    prob = jax.nn.softmax(logits, axis=-1)
    class_cost = -prob[:, tgt_ids]
    bbox_cost = jnp.abs(pbox[:, None, :] - tbox[None, :, :]).sum(-1)

    def to_xyxy(b):
        cx, cy, w, h = b[..., 0], b[..., 1], b[..., 2], b[..., 3]
        return jnp.stack([cx - w / 2, cy - h / 2, cx + w / 2, cy + h / 2], -1)

    b1, b2 = to_xyxy(pbox), to_xyxy(tbox)
    area1 = (b1[:, 2] - b1[:, 0]) * (b1[:, 3] - b1[:, 1])
    area2 = (b2[:, 2] - b2[:, 0]) * (b2[:, 3] - b2[:, 1])
    lt = jnp.maximum(b1[:, None, :2], b2[None, :, :2])
    rb = jnp.minimum(b1[:, None, 2:], b2[None, :, 2:])
    wh = jnp.clip(rb - lt, 0.0)
    inter = wh[..., 0] * wh[..., 1]
    union = area1[:, None] + area2[None, :] - inter
    iou = inter / union
    lt2 = jnp.minimum(b1[:, None, :2], b2[None, :, :2])
    rb2 = jnp.maximum(b1[:, None, 2:], b2[None, :, 2:])
    wh2 = jnp.clip(rb2 - lt2, 0.0)
    enc = wh2[..., 0] * wh2[..., 1]
    giou = iou - (enc - union) / enc
    return bw * bbox_cost + cw * class_cost + gw * (-giou)


if __name__ == "__main__":
    key = jax.random.PRNGKey(0)
    B, Q, C = 2, 8, 8                       # batch, num_query, num_classes
    k1, k2, k3, k4 = jax.random.split(key, 4)

    logits = jax.random.normal(k1, (B, Q, C), jnp.float32)
    cxcy = jax.random.uniform(k2, (B, Q, 2), jnp.float32, 0.2, 0.8)
    wh = jax.random.uniform(k3, (B, Q, 2), jnp.float32, 0.05, 0.3)
    bbox = jnp.concatenate([cxcy, wh], axis=-1)
    x = {'class': logits, 'bbox': bbox}

    sizes = [3, 4]
    y = []
    tkeys = jax.random.split(k4, 3 * len(sizes))
    for i, s in enumerate(sizes):
        kl, kc, kw = tkeys[3 * i], tkeys[3 * i + 1], tkeys[3 * i + 2]
        labels = jax.random.randint(kl, (s,), 0, C)
        tcxcy = jax.random.uniform(kc, (s, 2), jnp.float32, 0.2, 0.8)
        twh = jax.random.uniform(kw, (s, 2), jnp.float32, 0.05, 0.3)
        y.append({'labels': labels, 'boxes': jnp.concatenate([tcxcy, twh], axis=-1)})

    matcher = HungarianMatcher(class_cost=1.0, bbox_cost=5.0, giou_cost=2.0)

    # Run the Pallas kernel once and block on the result.
    logits_p, pbox_p, onehot_t, tbox_t, tile_q, _ = matcher._pad_inputs(x, y)
    cost_b = jax.block_until_ready(
        matcher.cost_matrix(logits_p, pbox_p, onehot_t, tbox_t, tile_q))   # (B, Qp, Mp)

    # Verify against the pure-JAX reference of the PyTorch forward (flat layout), comparing
    # only the per-image block-diagonal slices that the matcher actually consumes.
    # Tolerance relaxed vs. exact f32 because of bf16 MXU inputs and approx (EUP) reciprocals.
    logits_f = logits.reshape(B * Q, C)
    pbox_f = bbox.reshape(B * Q, 4)
    tgt_ids = jnp.concatenate([t['labels'] for t in y])
    tbox = jnp.concatenate([t['boxes'] for t in y])
    ref = np.asarray(_reference_cost(logits_f, pbox_f, tgt_ids, tbox, 1.0, 5.0, 2.0))
    offsets = np.cumsum([0] + sizes)
    cost_np = np.asarray(cost_b)
    for i in range(B):
        np.testing.assert_allclose(
            cost_np[i, :Q, :sizes[i]],
            ref[i * Q:(i + 1) * Q, offsets[i]:offsets[i + 1]],
            rtol=5e-3, atol=5e-3)

    # Full forward (cost matrix on TPU + host-side assignment), matching the module output.
    matches = matcher.forward(x, y)
    assert len(matches) == B
    for (ri, cj), s in zip(matches, sizes):
        assert ri.dtype == np.int64 and cj.dtype == np.int64
        assert ri.shape == (s,) and cj.shape == (s,)

    print("KERNEL_OK")
</pallas_src>

<mosaic_0001>
module attributes {stable_mosaic.version = 11 : i64} {
  func.func @kernel(%arg0: i32, %arg1: i32, %arg2: memref<1x8x128xf32, #tpu.memory_space<vmem>>, %arg3: memref<1x8x4xf32, #tpu.memory_space<vmem>>, %arg4: memref<1x128x128xbf16, #tpu.memory_space<vmem>>, %arg5: memref<1x4x128xf32, #tpu.memory_space<vmem>>, %arg6: memref<1x8x128xf32, #tpu.memory_space<vmem>>) attributes {dimension_semantics = [#tpu.dimension_semantics<parallel>, #tpu.dimension_semantics<parallel>], iteration_bounds = array<i64: 2, 1>, scalar_prefetch = 0 : i64, scratch_operands = 0 : i64, tpu.core_type = #tpu.core_type<tc>, window_params = [{transform_indices = @transform_0, window_bounds = array<i64: 1, 8, 128>}, {transform_indices = @transform_1, window_bounds = array<i64: 1, 8, 4>}, {transform_indices = @transform_2, window_bounds = array<i64: 1, 128, 128>}, {transform_indices = @transform_3, window_bounds = array<i64: 1, 4, 128>}, {transform_indices = @transform_4, window_bounds = array<i64: 1, 8, 128>}]} {
    %c0 = arith.constant 0 : index
    %c0_0 = arith.constant 0 : index
    %c0_1 = arith.constant 0 : index
    %0 = vector.load %arg2[%c0, %c0_0, %c0_1] : memref<1x8x128xf32, #tpu.memory_space<vmem>>, vector<1x8x128xf32>
    %1 = vector.shape_cast %0 : vector<1x8x128xf32> to vector<8x128xf32>
    %cst = arith.constant dense<0xFF800000> : vector<8xf32>
    %2 = vector.multi_reduction <maximumf>, %1, %cst [1] : vector<8x128xf32> to vector<8xf32>
    %3 = vector.shape_cast %2 : vector<8xf32> to vector<8x1xf32>
    %4 = vector.broadcast %3 : vector<8x1xf32> to vector<8x128xf32>
    %5 = arith.subf %1, %4 : vector<8x128xf32>
    %6 = math.exp %5 : vector<8x128xf32>
    %cst_2 = arith.constant dense<0.000000e+00> : vector<8xf32>
    %7 = vector.multi_reduction <add>, %6, %cst_2 [1] : vector<8x128xf32> to vector<8xf32>
    %8 = vector.shape_cast %7 : vector<8xf32> to vector<8x1xf32>
    %9 = tpu.reciprocal %8 {approx = true} : vector<8x1xf32> -> vector<8x1xf32>
    %10 = arith.truncf %6 : vector<8x128xf32> to vector<8x128xbf16>
    %c0_3 = arith.constant 0 : index
    %c0_4 = arith.constant 0 : index
    %c0_5 = arith.constant 0 : index
    %11 = vector.load %arg4[%c0_3, %c0_4, %c0_5] : memref<1x128x128xbf16, #tpu.memory_space<vmem>>, vector<1x128x128xbf16>
    %12 = vector.shape_cast %11 : vector<1x128x128xbf16> to vector<128x128xbf16>
    %cst_6 = arith.constant dense<0.000000e+00> : vector<8x128xf32>
    %13 = tpu.matmul %10, %12, %cst_6 {dimension_numbers = #tpu.dot_dimension_numbers<[1], [0], [0], [1], [0, 0, 1, 1], [], []>} : vector<8x128xbf16>, vector<128x128xbf16>, vector<8x128xf32> -> vector<8x128xf32>
    %14 = vector.broadcast %9 : vector<8x1xf32> to vector<8x128xf32>
    %15 = arith.mulf %13, %14 : vector<8x128xf32>
    %cst_7 = arith.constant -1.000000e+00 : f32
    %16 = vector.broadcast %cst_7 : f32 to vector<8x128xf32>
    %17 = arith.mulf %16, %15 : vector<8x128xf32>
    %c0_8 = arith.constant 0 : index
    %c0_9 = arith.constant 0 : index
    %c0_10 = arith.constant 0 : index
    %18 = vector.load %arg6[%c0_8, %c0_9, %c0_10] : memref<1x8x128xf32, #tpu.memory_space<vmem>>, vector<1x8x128xf32>
    %19 = vector.shape_cast %18 : vector<1x8x128xf32> to vector<8x128xf32>
    %20 = vector.shape_cast %17 : vector<8x128xf32> to vector<1x8x128xf32>
    tpu.vector_store %arg6[%c0_8, %c0_9, %c0_10], %20 {strides = array<i32>} : memref<1x8x128xf32, #tpu.memory_space<vmem>>, vector<1x8x128xf32>,
    %c0_11 = arith.constant 0 : index
    %c0_12 = arith.constant 0 : index
    %c0_13 = arith.constant 0 : index
    %21 = vector.load %arg5[%c0_11, %c0_12, %c0_13] : memref<1x4x128xf32, #tpu.memory_space<vmem>>, vector<1x4x128xf32>
    %22 = vector.shape_cast %21 : vector<1x4x128xf32> to vector<4x128xf32>
    %23 = vector.extract_strided_slice %22 {offsets = [0, 0], sizes = [1, 128], strides = [1, 1]} : vector<4x128xf32> to vector<1x128xf32>
    %24 = vector.extract_strided_slice %22 {offsets = [1, 0], sizes = [1, 128], strides = [1, 1]} : vector<4x128xf32> to vector<1x128xf32>
    %25 = vector.extract_strided_slice %22 {offsets = [2, 0], sizes = [1, 128], strides = [1, 1]} : vector<4x128xf32> to vector<1x128xf32>
    %26 = vector.extract_strided_slice %22 {offsets = [3, 0], sizes = [1, 128], strides = [1, 1]} : vector<4x128xf32> to vector<1x128xf32>
    %cst_14 = arith.constant 5.000000e-01 : f32
    %27 = vector.broadcast %cst_14 : f32 to vector<1x128xf32>
    %28 = arith.mulf %27, %25 : vector<1x128xf32>
    %29 = arith.subf %23, %28 : vector<1x128xf32>
    %cst_15 = arith.constant 5.000000e-01 : f32
    %30 = vector.broadcast %cst_15 : f32 to vector<1x128xf32>
    %31 = arith.mulf %30, %26 : vector<1x128xf32>
    %32 = arith.subf %24, %31 : vector<1x128xf32>
    %cst_16 = arith.constant 5.000000e-01 : f32
    %33 = vector.broadcast %cst_16 : f32 to vector<1x128xf32>
    %34 = arith.mulf %33, %25 : vector<1x128xf32>
    %35 = arith.addf %23, %34 : vector<1x128xf32>
    %cst_17 = arith.constant 5.000000e-01 : f32
    %36 = vector.broadcast %cst_17 : f32 to vector<1x128xf32>
    %37 = arith.mulf %36, %26 : vector<1x128xf32>
    %38 = arith.addf %24, %37 : vector<1x128xf32>
    %39 = arith.subf %35, %29 : vector<1x128xf32>
    %40 = arith.subf %38, %32 : vector<1x128xf32>
    %41 = arith.mulf %39, %40 : vector<1x128xf32>
    %c0_i32 = arith.constant 0 : i32
    %c8_i32 = arith.constant 8 : i32
    %42 = arith.muli %c0_i32, %c8_i32 : i32
    %43 = tpu.assume_multiple %42, 8 : i32
    %c0_18 = arith.constant 0 : index
    %44 = arith.index_cast %43 : i32 to index
    %c0_19 = arith.constant 0 : index
    %45 = vector.load %arg3[%c0_18, %44, %c0_19] : memref<1x8x4xf32, #tpu.memory_space<vmem>>, vector<1x8x4xf32>
    %46 = vector.shape_cast %45 : vector<1x8x4xf32> to vector<8x4xf32>
    %47 = vector.extract_strided_slice %46 {offsets = [0, 0], sizes = [8, 1], strides = [1, 1]} : vector<8x4xf32> to vector<8x1xf32>
    %48 = vector.extract_strided_slice %46 {offsets = [0, 1], sizes = [8, 1], strides = [1, 1]} : vector<8x4xf32> to vector<8x1xf32>
    %49 = vector.extract_strided_slice %46 {offsets = [0, 2], sizes = [8, 1], strides = [1, 1]} : vector<8x4xf32> to vector<8x1xf32>
    %50 = vector.extract_strided_slice %46 {offsets = [0, 3], sizes = [8, 1], strides = [1, 1]} : vector<8x4xf32> to vector<8x1xf32>
    %51 = vector.broadcast %47 : vector<8x1xf32> to vector<8x128xf32>
    %52 = vector.broadcast %23 : vector<1x128xf32> to vector<8x128xf32>
    %53 = arith.subf %51, %52 : vector<8x128xf32>
    %54 = math.absf %53 : vector<8x128xf32>
    %55 = vector.broadcast %48 : vector<8x1xf32> to vector<8x128xf32>
    %56 = vector.broadcast %24 : vector<1x128xf32> to vector<8x128xf32>
    %57 = arith.subf %55, %56 : vector<8x128xf32>
    %58 = math.absf %57 : vector<8x128xf32>
    %59 = arith.addf %54, %58 : vector<8x128xf32>
    %60 = vector.broadcast %49 : vector<8x1xf32> to vector<8x128xf32>
    %61 = vector.broadcast %25 : vector<1x128xf32> to vector<8x128xf32>
    %62 = arith.subf %60, %61 : vector<8x128xf32>
    %63 = math.absf %62 : vector<8x128xf32>
    %64 = arith.addf %59, %63 : vector<8x128xf32>
    %65 = vector.broadcast %50 : vector<8x1xf32> to vector<8x128xf32>
    %66 = vector.broadcast %26 : vector<1x128xf32> to vector<8x128xf32>
    %67 = arith.subf %65, %66 : vector<8x128xf32>
    %68 = math.absf %67 : vector<8x128xf32>
    %69 = arith.addf %64, %68 : vector<8x128xf32>
    %cst_20 = arith.constant 5.000000e-01 : f32
    %70 = vector.broadcast %cst_20 : f32 to vector<8x1xf32>
    %71 = arith.mulf %70, %49 : vector<8x1xf32>
    %72 = arith.subf %47, %71 : vector<8x1xf32>
    %cst_21 = arith.constant 5.000000e-01 : f32
    %73 = vector.broadcast %cst_21 : f32 to vector<8x1xf32>
    %74 = arith.mulf %73, %50 : vector<8x1xf32>
    %75 = arith.subf %48, %74 : vector<8x1xf32>
    %cst_22 = arith.constant 5.000000e-01 : f32
    %76 = vector.broadcast %cst_22 : f32 to vector<8x1xf32>
    %77 = arith.mulf %76, %49 : vector<8x1xf32>
    %78 = arith.addf %47, %77 : vector<8x1xf32>
    %cst_23 = arith.constant 5.000000e-01 : f32
    %79 = vector.broadcast %cst_23 : f32 to vector<8x1xf32>
    %80 = arith.mulf %79, %50 : vector<8x1xf32>
    %81 = arith.addf %48, %80 : vector<8x1xf32>
    %82 = arith.subf %78, %72 : vector<8x1xf32>
    %83 = arith.subf %81, %75 : vector<8x1xf32>
    %84 = arith.mulf %82, %83 : vector<8x1xf32>
    %85 = vector.broadcast %78 : vector<8x1xf32> to vector<8x128xf32>
    %86 = vector.broadcast %35 : vector<1x128xf32> to vector<8x128xf32>
    %87 = arith.minimumf %85, %86 : vector<8x128xf32>
    %88 = vector.broadcast %72 : vector<8x1xf32> to vector<8x128xf32>
    %89 = vector.broadcast %29 : vector<1x128xf32> to vector<8x128xf32>
    %90 = arith.maximumf %88, %89 : vector<8x128xf32>
    %91 = arith.subf %87, %90 : vector<8x128xf32>
    %cst_24 = arith.constant 0.000000e+00 : f32
    %92 = vector.broadcast %cst_24 : f32 to vector<8x128xf32>
    %93 = arith.maximumf %91, %92 : vector<8x128xf32>
    %94 = vector.broadcast %81 : vector<8x1xf32> to vector<8x128xf32>
    %95 = vector.broadcast %38 : vector<1x128xf32> to vector<8x128xf32>
    %96 = arith.minimumf %94, %95 : vector<8x128xf32>
    %97 = vector.broadcast %75 : vector<8x1xf32> to vector<8x128xf32>
    %98 = vector.broadcast %32 : vector<1x128xf32> to vector<8x128xf32>
    %99 = arith.maximumf %97, %98 : vector<8x128xf32>
    %100 = arith.subf %96, %99 : vector<8x128xf32>
    %cst_25 = arith.constant 0.000000e+00 : f32
    %101 = vector.broadcast %cst_25 : f32 to vector<8x128xf32>
    %102 = arith.maximumf %100, %101 : vector<8x128xf32>
    %103 = arith.mulf %93, %102 : vector<8x128xf32>
    %104 = vector.broadcast %84 : vector<8x1xf32> to vector<8x128xf32>
    %105 = vector.broadcast %41 : vector<1x128xf32> to vector<8x128xf32>
    %106 = arith.addf %104, %105 : vector<8x128xf32>
    %107 = arith.subf %106, %103 : vector<8x128xf32>
    %cst_26 = arith.constant 9.99999996E-13 : f32
    %108 = vector.broadcast %cst_26 : f32 to vector<8x128xf32>
    %109 = arith.maximumf %107, %108 : vector<8x128xf32>
    %110 = tpu.reciprocal %109 {approx = true} : vector<8x128xf32> -> vector<8x128xf32>
    %111 = arith.mulf %103, %110 : vector<8x128xf32>
    %112 = vector.broadcast %78 : vector<8x1xf32> to vector<8x128xf32>
    %113 = vector.broadcast %35 : vector<1x128xf32> to vector<8x128xf32>
    %114 = arith.maximumf %112, %113 : vector<8x128xf32>
    %115 = vector.broadcast %72 : vector<8x1xf32> to vector<8x128xf32>
    %116 = vector.broadcast %29 : vector<1x128xf32> to vector<8x128xf32>
    %117 = arith.minimumf %115, %116 : vector<8x128xf32>
    %118 = arith.subf %114, %117 : vector<8x128xf32>
    %cst_27 = arith.constant 0.000000e+00 : f32
    %119 = vector.broadcast %cst_27 : f32 to vector<8x128xf32>
    %120 = arith.maximumf %118, %119 : vector<8x128xf32>
    %121 = vector.broadcast %81 : vector<8x1xf32> to vector<8x128xf32>
    %122 = vector.broadcast %38 : vector<1x128xf32> to vector<8x128xf32>
    %123 = arith.maximumf %121, %122 : vector<8x128xf32>
    %124 = vector.broadcast %75 : vector<8x1xf32> to vector<8x128xf32>
    %125 = vector.broadcast %32 : vector<1x128xf32> to vector<8x128xf32>
    %126 = arith.minimumf %124, %125 : vector<8x128xf32>
    %127 = arith.subf %123, %126 : vector<8x128xf32>
    %cst_28 = arith.constant 0.000000e+00 : f32
    %128 = vector.broadcast %cst_28 : f32 to vector<8x128xf32>
    %129 = arith.maximumf %127, %128 : vector<8x128xf32>
    %130 = arith.mulf %120, %129 : vector<8x128xf32>
    %131 = arith.subf %130, %107 : vector<8x128xf32>
    %cst_29 = arith.constant 9.99999996E-13 : f32
    %132 = vector.broadcast %cst_29 : f32 to vector<8x128xf32>
    %133 = arith.maximumf %130, %132 : vector<8x128xf32>
    %134 = tpu.reciprocal %133 {approx = true} : vector<8x128xf32> -> vector<8x128xf32>
    %135 = arith.mulf %131, %134 : vector<8x128xf32>
    %136 = arith.subf %135, %111 : vector<8x128xf32>
    %c0_30 = arith.constant 0 : index
    %137 = arith.index_cast %43 : i32 to index
    %c0_31 = arith.constant 0 : index
    %138 = vector.load %arg6[%c0_30, %137, %c0_31] : memref<1x8x128xf32, #tpu.memory_space<vmem>>, vector<1x8x128xf32>
    %139 = vector.shape_cast %138 : vector<1x8x128xf32> to vector<8x128xf32>
    %cst_32 = arith.constant 5.000000e+00 : f32
    %140 = vector.broadcast %cst_32 : f32 to vector<8x128xf32>
    %141 = arith.mulf %140, %69 : vector<8x128xf32>
    %142 = arith.addf %139, %141 : vector<8x128xf32>
    %cst_33 = arith.constant 2.000000e+00 : f32
    %143 = vector.broadcast %cst_33 : f32 to vector<8x128xf32>
    %144 = arith.mulf %143, %136 : vector<8x128xf32>
    %145 = arith.addf %142, %144 : vector<8x128xf32>
    %c0_34 = arith.constant 0 : index
    %146 = arith.index_cast %43 : i32 to index
    %c0_35 = arith.constant 0 : index
    %147 = vector.load %arg6[%c0_34, %146, %c0_35] : memref<1x8x128xf32, #tpu.memory_space<vmem>>, vector<1x8x128xf32>
    %148 = vector.shape_cast %147 : vector<1x8x128xf32> to vector<8x128xf32>
    %149 = vector.shape_cast %145 : vector<8x128xf32> to vector<1x8x128xf32>
    tpu.vector_store %arg6[%c0_34, %146, %c0_35], %149 {strides = array<i32>} : memref<1x8x128xf32, #tpu.memory_space<vmem>>, vector<1x8x128xf32>,
    %c1_i32 = arith.constant 1 : i32
    return
  }
  func.func @transform_0(%arg0: i32, %arg1: i32) -> (i32, i32, i32) {
    %c0_i32 = arith.constant 0 : i32
    %c0_i32_0 = arith.constant 0 : i32
    return %arg0, %arg1, %c0_i32 : i32, i32, i32
  }
  func.func @transform_1(%arg0: i32, %arg1: i32) -> (i32, i32, i32) {
    %c0_i32 = arith.constant 0 : i32
    %c0_i32_0 = arith.constant 0 : i32
    return %arg0, %arg1, %c0_i32 : i32, i32, i32
  }
  func.func @transform_2(%arg0: i32, %arg1: i32) -> (i32, i32, i32) {
    %c0_i32 = arith.constant 0 : i32
    %c0_i32_0 = arith.constant 0 : i32
    %c0_i32_1 = arith.constant 0 : i32
    return %arg0, %c0_i32, %c0_i32_0 : i32, i32, i32
  }
  func.func @transform_3(%arg0: i32, %arg1: i32) -> (i32, i32, i32) {
    %c0_i32 = arith.constant 0 : i32
    %c0_i32_0 = arith.constant 0 : i32
    %c0_i32_1 = arith.constant 0 : i32
    return %arg0, %c0_i32, %c0_i32_0 : i32, i32, i32
  }
  func.func @transform_4(%arg0: i32, %arg1: i32) -> (i32, i32, i32) {
    %c0_i32 = arith.constant 0 : i32
    %c0_i32_0 = arith.constant 0 : i32
    return %arg0, %arg1, %c0_i32 : i32, i32, i32
  }
}

</mosaic_0001>

<llo_original>
// kernel: tpu_custom_call.1
$region0: #{tpu_custom_call.1}
  #allocation0 [shape = 'u32[]', space=smem, size = 0x4, offset = 0x4, fixed_abs, tag = 'smem constant byte address 0x4 - core index']
  #allocation1 [shape = 'u32[144,128]{1,0:T(1,128)}', space=vmem, size = 0x12000, scoped, tag = 'internal scratch']
  %s0 = inlined_call_operand.vmem [shape: f32[2,8,128], index: 0, kind: input, shape index: {}]
  %s1 = inlined_call_operand.vmem [shape: f32[2,8,4], index: 1, kind: input, shape index: {}]
  %s2 = inlined_call_operand.hbm [shape: bf16[2,128,128], index: 2, kind: input, shape index: {}]
  %s3 = inlined_call_operand.vmem [shape: f32[2,4,128], index: 3, kind: input, shape index: {}]
  %s4 = inlined_call_operand.hbm [shape: f32[2,8,128], index: 4, kind: output, shape index: {}]
  %s5 = sld [smem:[#allocation0]]
  $region53: #{tpu_custom_call.1} parent=0
    _
  %s7 = ssub.s32 1, %s5
  %s8 = scalar_select 0, %s7, %s5
  $region1: #{tpu_custom_call.1} parent=0
    #allocation2 [shape = 'u8[65536]{0}', space=vmem, size = 0x10000, scoped, tag = 'input window, operand 2']
    #allocation3 [shape = 's32[2]{0}', space=sflag, size = 0x8, scoped, tag = 'scoped memory for tpu_custom_call.1']
    #allocation4 [shape = 's32[2]{0}', space=sflag, size = 0x8, scoped, tag = 'scoped memory for tpu_custom_call.1']
    #allocation5 [shape = 'u8[8192]{0}', space=vmem, size = 0x2000, scoped, tag = 'output window, operand 0']
    %9 = vsyncpa [#allocation3], 0
    %s10 = scalar_lea.sflag [#allocation3], 1
    %11 = vsyncpa %s10, 0
    %12 = vsyncpa [#allocation4], 0
    %s13 = scalar_lea.sflag [#allocation4], 1
    %14 = vsyncpa %s13, 0
    loop: start=0, step=1, limit=4
    $region2: #{tpu_custom_call.1} parent=1 // loop_pre_header
      _
    $region3: #{tpu_custom_call.1} parent=1 // loop_header
      %s16 = sphi 0, %s20
      %p17 = scmp.ge.s32.totalorder %s16, 4
      %s23 = sphi 0, %s35
      %s24 = sphi 0, %s31
      %s25 = sphi 0, %s23
      %s26 = sphi 0, %s24
      %s27 = sphi 0, %s25
      %s28 = sphi 0, %s26
      %s40 = sphi 0, %s42
      %s43 = sphi 0, %s40
      %s44 = sphi 0, %s43
      %s60 = sphi 0, %s44
      %s68 = sphi 0, %s70
      %s71 = sphi 0, %s68
      %s72 = sphi 0, %s71
      %s88 = sphi 0, %s72
      %s94 = sphi 0, %s96
      %s97 = sphi 0, %s94
      %s98 = sphi 0, %s97
      %s114 = sphi 0, %s98
      %s120 = sphi 0, %s122
      %s123 = sphi 0, %s120
      %s124 = sphi 0, %s123
      %s140 = sphi 0, %s124
      %s148 = sphi 0, %s150
      %s151 = sphi 0, %s148
      %s152 = sphi 0, %s151
      %s168 = sphi 0, %s152
    $region4: #{tpu_custom_call.1} parent=1 // loop_header_branch
      %19 = sbr.rel (%p17) target = $region8
    $region5: #{tpu_custom_call.1} parent=1 // loop_body
      %s21 = ssub.s32 %s16, 1
      %s22 = ssub.s32 %s16, 2
      %s29 = sadd.s32 1, %s24
      %p30 = scmp.ge.s32.totalorder %s29, 1
      %s31 = scalar_select %p30, 0, %s29
      %s32 = sadd.s32 1, %s23
      %s33 = scalar_select %p30, %s32, %s23
      %p34 = scmp.ge.s32.totalorder %s33, 2
      %s35 = scalar_select %p34, 0, %s33
      %s36 = ssub.s32 %s23, %s35
      %s37 = ssub.s32 %s24, %s31
      %s38 = sor.u32 %s36, %s37
      %p39 = scmp.eq.s32.totalorder %s38, 0
      %s41 = sadd.s32 %s40, 1
      %s42 = scalar_select %p39, %s40, %s41
      %p45 = pneg %p39
      %p46 = scmp.eq.s32.totalorder %s16, 1
      %p47 = por %p45, %p46
      %p48 = scmp.ne.s32.totalorder %s40, %s43
      %p49 = scmp.eq.s32.totalorder %s16, 0
      %p50 = por %p48, %p49
      %p51 = scmp.ne.s32.totalorder %s40, %s43
      %p52 = scmp.eq.s32.totalorder %s21, 1
      %p53 = por %p51, %p52
      %p54 = scmp.ne.s32.totalorder %s43, %s44
      %p55 = scmp.eq.s32.totalorder %s21, 0
      %p56 = por %p54, %p55
      %p57 = scmp.ne.s32.totalorder %s43, %s44
      %p58 = scmp.eq.s32.totalorder %s22, 1
      %p59 = por %p57, %p58
      %p61 = scmp.ne.s32.totalorder %s44, %s60
      %p62 = scmp.eq.s32.totalorder %s22, 0
      %p63 = por %p61, %p62
      %s64 = ssub.s32 %s23, %s35
      %s65 = ssub.s32 %s24, %s31
      %s66 = sor.u32 %s64, %s65
      %p67 = scmp.eq.s32.totalorder %s66, 0
      %s69 = sadd.s32 %s68, 1
      %s70 = scalar_select %p67, %s68, %s69
      %p73 = pneg %p67
      %p74 = scmp.eq.s32.totalorder %s16, 1
      %p75 = por %p73, %p74
      %p76 = scmp.ne.s32.totalorder %s68, %s71
      %p77 = scmp.eq.s32.totalorder %s16, 0
      %p78 = por %p76, %p77
      %p79 = scmp.ne.s32.totalorder %s68, %s71
      %p80 = scmp.eq.s32.totalorder %s21, 1
      %p81 = por %p79, %p80
      %p82 = scmp.ne.s32.totalorder %s71, %s72
      %p83 = scmp.eq.s32.totalorder %s21, 0
      %p84 = por %p82, %p83
      %p85 = scmp.ne.s32.totalorder %s71, %s72
      %p86 = scmp.eq.s32.totalorder %s22, 1
      %p87 = por %p85, %p86
      %p89 = scmp.ne.s32.totalorder %s72, %s88
      %p90 = scmp.eq.s32.totalorder %s22, 0
      %p91 = por %p89, %p90
      %s92 = ssub.s32 %s23, %s35
      %p93 = scmp.eq.s32.totalorder %s92, 0
      %s95 = sadd.s32 %s94, 1
      %s96 = scalar_select %p93, %s94, %s95
      %p99 = pneg %p93
      %p100 = scmp.eq.s32.totalorder %s16, 1
      %p101 = por %p99, %p100
      %p102 = scmp.ne.s32.totalorder %s94, %s97
      %p103 = scmp.eq.s32.totalorder %s16, 0
      %p104 = por %p102, %p103
      %p105 = scmp.ne.s32.totalorder %s94, %s97
      %p106 = scmp.eq.s32.totalorder %s21, 1
      %p107 = por %p105, %p106
      %p108 = scmp.ne.s32.totalorder %s97, %s98
      %p109 = scmp.eq.s32.totalorder %s21, 0
      %p110 = por %p108, %p109
      %p111 = scmp.ne.s32.totalorder %s97, %s98
      %p112 = scmp.eq.s32.totalorder %s22, 1
      %p113 = por %p111, %p112
      %p115 = scmp.ne.s32.totalorder %s98, %s114
      %p116 = scmp.eq.s32.totalorder %s22, 0
      %p117 = por %p115, %p116
      %s118 = ssub.s32 %s23, %s35
      %p119 = scmp.eq.s32.totalorder %s118, 0
      %s121 = sadd.s32 %s120, 1
      %s122 = scalar_select %p119, %s120, %s121
      %p125 = pneg %p119
      %p126 = scmp.eq.s32.totalorder %s16, 1
      %p127 = por %p125, %p126
      %p128 = scmp.ne.s32.totalorder %s120, %s123
      %p129 = scmp.eq.s32.totalorder %s16, 0
      %p130 = por %p128, %p129
      %p131 = scmp.ne.s32.totalorder %s120, %s123
      %p132 = scmp.eq.s32.totalorder %s21, 1
      %p133 = por %p131, %p132
      %p134 = scmp.ne.s32.totalorder %s123, %s124
      %p135 = scmp.eq.s32.totalorder %s21, 0
      %p136 = por %p134, %p135
      %p137 = scmp.ne.s32.totalorder %s123, %s124
      %p138 = scmp.eq.s32.totalorder %s22, 1
      %p139 = por %p137, %p138
      %p141 = scmp.ne.s32.totalorder %s124, %s140
      %p142 = scmp.eq.s32.totalorder %s22, 0
      %p143 = por %p141, %p142
      %s144 = ssub.s32 %s23, %s35
      %s145 = ssub.s32 %s24, %s31
      %s146 = sor.u32 %s144, %s145
      %p147 = scmp.eq.s32.totalorder %s146, 0
      %s149 = sadd.s32 %s148, 1
      %s150 = scalar_select %p147, %s148, %s149
      %p153 = pneg %p147
      %p154 = scmp.eq.s32.totalorder %s16, 1
      %p155 = por %p153, %p154
      %p156 = scmp.ne.s32.totalorder %s148, %s151
      %p157 = scmp.eq.s32.totalorder %s16, 0
      %p158 = por %p156, %p157
      %p159 = scmp.ne.s32.totalorder %s148, %s151
      %p160 = scmp.eq.s32.totalorder %s21, 1
      %p161 = por %p159, %p160
      %p162 = scmp.ne.s32.totalorder %s151, %s152
      %p163 = scmp.eq.s32.totalorder %s21, 0
      %p164 = por %p162, %p163
      %p165 = scmp.ne.s32.totalorder %s151, %s152
      %p166 = scmp.eq.s32.totalorder %s22, 1
      %p167 = por %p165, %p166
      %p169 = scmp.ne.s32.totalorder %s152, %s168
      %p170 = scmp.eq.s32.totalorder %s22, 0
      %p171 = por %p169, %p170
      %p172 = scmp.le.s32.totalorder 1, %s16
      %p173 = scmp.lt.s32.totalorder %s16, 3
      %p174 = pnand %p172, %p173
      %p175 = pneg %p174
      // Predicated region
      $region9: #{tpu_custom_call.1} parent=5 // pred_check
        _
      $region10: #{tpu_custom_call.1} parent=5 // pred_check_branch
        %177 = sbr.rel (%p174) target = $region12
      $region11: #{tpu_custom_call.1} parent=5 // pred_region
        %s178 = ssub.s32 %s16, 1
      $region12: #{tpu_custom_call.1} parent=5 // pred_fallthru
        _
      %p179 = scmp.lt.s32.totalorder %s16, 2
      // Predicated region
      $region13: #{tpu_custom_call.1} parent=5 // pred_check
        %p180 = pneg %p179
      $region14: #{tpu_custom_call.1} parent=5 // pred_check_branch
        %182 = sbr.rel (%p180) target = $region16
      $region15: #{tpu_custom_call.1} parent=5 // pred_region
        // Predicated region
        $region17: #{tpu_custom_call.1} parent=15 // pred_check
          %p183 = pneg %p50
        $region18: #{tpu_custom_call.1} parent=15 // pred_check_branch
          %185 = sbr.rel (%p183) target = $region20
        $region19: #{tpu_custom_call.1} parent=15 // pred_region
          %p186 = scmp.lt.s32.totalorder %s23, 1
          %s187 = scalar_select %p186, %s23, 1
          %p188 = scmp.lt.s32.totalorder %s24, 0
          %s189 = scalar_select %p188, %s24, 0
          %s190 = sadd.s32 %s189, %s187
          %s191 = smul.addr %s190, 8
          %s192 = scalar_lea.vmem %s0, %s191
        $region20: #{tpu_custom_call.1} parent=15 // pred_fallthru
          _
        // Predicated region
        $region21: #{tpu_custom_call.1} parent=15 // pred_check
          %p193 = pneg %p78
        $region22: #{tpu_custom_call.1} parent=15 // pred_check_branch
          %195 = sbr.rel (%p193) target = $region24
        $region23: #{tpu_custom_call.1} parent=15 // pred_region
          %p196 = scmp.lt.s32.totalorder %s23, 1
          %s197 = scalar_select %p196, %s23, 1
          %p198 = scmp.lt.s32.totalorder %s24, 0
          %s199 = scalar_select %p198, %s24, 0
          %s200 = sadd.s32 %s199, %s197
          %s201 = smul.addr %s200, 8
          %s202 = scalar_lea.vmem %s1, %s201
        $region24: #{tpu_custom_call.1} parent=15 // pred_fallthru
          _
        // Predicated region
        $region25: #{tpu_custom_call.1} parent=15 // pred_check
          %p203 = pneg %p104
        $region26: #{tpu_custom_call.1} parent=15 // pred_check_branch
          %205 = sbr.rel (%p203) target = $region28
        $region27: #{tpu_custom_call.1} parent=15 // pred_region
          %s206 = sand.u32 %s94, 1
          %s207 = scalar_lea.sflag [#allocation3], %s206
          %s208 = sand.u32 %s94, 1
          %s209 = smul.addr %s208, 64
          %s210 = scalar_lea.vmem [#allocation2], %s209
          %s212 = ssub.s32 1024, 1024
          %213 = vsyncadd %s207, %s212
          %s214 = smul.addr %s23, 16
          %s215 = smul.addr %s214, 64
          %s216 = scalar_lea.hbm %s2, %s215
          %s217 = sshll.u32 %s210, 4
          %s218 = int_to_ptr.vmem [resolvable:$true] %s217
          %223 = dma.hbm_to_vmem [thread:$0]  %s216, 1024, %s218, %s207, 64, 64, 4
        $region28: #{tpu_custom_call.1} parent=15 // pred_fallthru
          _
        // Predicated region
        $region29: #{tpu_custom_call.1} parent=15 // pred_check
          %p224 = pneg %p130
        $region30: #{tpu_custom_call.1} parent=15 // pred_check_branch
          %226 = sbr.rel (%p224) target = $region32
        $region31: #{tpu_custom_call.1} parent=15 // pred_region
          %p227 = scmp.lt.s32.totalorder %s23, 1
          %s228 = scalar_select %p227, %s23, 1
          %s229 = smul.addr %s228, 4
          %s230 = scalar_lea.vmem %s3, %s229
        $region32: #{tpu_custom_call.1} parent=15 // pred_fallthru
          _
      $region16: #{tpu_custom_call.1} parent=5 // pred_fallthru
        _
      %p231 = scmp.le.s32.totalorder 1, %s16
      %p232 = scmp.lt.s32.totalorder %s16, 3
      %p233 = pnand %p231, %p232
      %p234 = pneg %p233
      // Predicated region
      $region33: #{tpu_custom_call.1} parent=5 // pred_check
        _
      $region34: #{tpu_custom_call.1} parent=5 // pred_check_branch
        %236 = sbr.rel (%p233) target = $region36
      $region35: #{tpu_custom_call.1} parent=5 // pred_region
        %s237 = ssub.s32 %s16, 1
        %s238 = sand.u32 %s97, 1
        %s239 = scalar_lea.sflag [#allocation3], %s238
        %s240 = sand.u32 %s97, 1
        %s241 = smul.addr %s240, 64
        %s242 = scalar_lea.vmem [#allocation2], %s241
        // Predicated region
        $region37: #{tpu_custom_call.1} parent=35 // pred_check
          %p243 = pneg %p110
        $region38: #{tpu_custom_call.1} parent=35 // pred_check_branch
          %245 = sbr.rel (%p243) target = $region40
        $region39: #{tpu_custom_call.1} parent=35 // pred_region
          %246 = dma.done %s239, 1024
        $region40: #{tpu_custom_call.1} parent=35 // pred_fallthru
          _
        %p247 = scmp.lt.s32.totalorder %s25, 1
        %s248 = scalar_select %p247, %s25, 1
        %p249 = scmp.lt.s32.totalorder %s26, 0
        %s250 = scalar_select %p249, %s26, 0
        %s251 = sadd.s32 %s250, %s248
        %s252 = smul.addr %s251, 8
        %s253 = scalar_lea.vmem %s0, %s252
        %p254 = pneg %p56
        %p255 = pneg %p53
        %p256 = scmp.lt.s32.totalorder %s25, 1
        %s257 = scalar_select %p256, %s25, 1
        %p258 = scmp.lt.s32.totalorder %s26, 0
        %s259 = scalar_select %p258, %s26, 0
        %s260 = sadd.s32 %s259, %s257
        %s261 = smul.addr %s260, 8
        %s262 = scalar_lea.vmem %s1, %s261
        %p263 = pneg %p84
        %p264 = pneg %p81
        %s265 = sand.u32 %s97, 1
        %s266 = scalar_lea.sflag [#allocation3], %s265
        %s267 = sand.u32 %s97, 1
        %s268 = smul.addr %s267, 64
        %s269 = scalar_lea.vmem [#allocation2], %s268
        %p270 = pneg %p110
        %p271 = pneg %p107
        %p272 = scmp.lt.s32.totalorder %s25, 1
        %s273 = scalar_select %p272, %s25, 1
        %s274 = smul.addr %s273, 4
        %s275 = scalar_lea.vmem %s3, %s274
        %p276 = pneg %p136
        %p277 = pneg %p133
        %p278 = pneg %p164
        %p279 = pneg %p161
        %s280 = sand.u32 %s151, 1
        %s281 = scalar_lea.sflag [#allocation4], %s280
        %s282 = sand.u32 %s151, 1
        %s283 = smul.addr %s282, 8
        %s284 = scalar_lea.vmem [#allocation5], %s283
        %p285 = scmp.lt.s32.totalorder %s25, 1
        %s286 = scalar_select %p285, %s25, 1
        %p287 = scmp.lt.s32.totalorder %s26, 0
        %s288 = scalar_select %p287, %s26, 0
        %s289 = sadd.s32 %s288, %s286
        %s290 = smul.addr %s289, 8
        %s291 = scalar_lea.vmem %s0, %s290
        %p292 = scmp.lt.s32.totalorder %s25, 1
        %s293 = scalar_select %p292, %s25, 1
        %p294 = scmp.lt.s32.totalorder %s26, 0
        %s295 = scalar_select %p294, %s26, 0
        %s296 = sadd.s32 %s295, %s293
        %s297 = smul.addr %s296, 8
        %s298 = scalar_lea.vmem %s1, %s297
        %p299 = scmp.lt.s32.totalorder %s25, 1
        %s300 = scalar_select %p299, %s25, 1
        %s301 = smul.addr %s300, 4
        %s302 = scalar_lea.vmem %s3, %s301
        %v304 = vld [vmem:[%s291] sm:$0xff]
        %305 = vmax.xlane.f32.xlu0 %v304
        %v306 = vpop.xlane.xlu0 %305
        %v307 = vsub.f32 %v304, %v306
        %v308 = vmul.f32 %v307, 1.442695
        %v309 = vpow.pop %v308
        %310 = vadd.xlane.f32.xlu0 %v309
        %v311 = vpop.xlane.xlu0 %310
        %v312 = vrcp.pop %v311
        %v313 = vpack.c.bf16 %v309, %v309
        %v314 = vld [vmem:[%s242] sm:$0xf]
        %v315 = vld [vmem:[%s242 + $0x4] sm:$0xf]
        %v316 = vld [vmem:[%s242 + $0x8] sm:$0xf]
        %v317 = vld [vmem:[%s242 + $0xc] sm:$0xf]
        %v318 = vld [vmem:[%s242 + $0x10] sm:$0xf]
        %v319 = vld [vmem:[%s242 + $0x14] sm:$0xf]
        %v320 = vld [vmem:[%s242 + $0x18] sm:$0xf]
        %v321 = vld [vmem:[%s242 + $0x1c] sm:$0xf]
        %v322 = vld [vmem:[%s242 + $0x20] sm:$0xf]
        %v323 = vld [vmem:[%s242 + $0x24] sm:$0xf]
        %v324 = vld [vmem:[%s242 + $0x28] sm:$0xf]
        %v325 = vld [vmem:[%s242 + $0x2c] sm:$0xf]
        %v326 = vld [vmem:[%s242 + $0x30] sm:$0xf]
        %v327 = vld [vmem:[%s242 + $0x34] sm:$0xf]
        %v328 = vld [vmem:[%s242 + $0x38] sm:$0xf]
        %v329 = vld [vmem:[%s242 + $0x3c] sm:$0xf]
        %v346 = vunpack.c.l.b16 %v314
        %v347 = vunpack.c.l.b16 %v315
        %v348 = vunpack.c.l.b16 %v316
        %v349 = vunpack.c.l.b16 %v317
        %v350 = vunpack.c.l.b16 %v318
        %v351 = vunpack.c.l.b16 %v319
        %v352 = vunpack.c.l.b16 %v320
        %v353 = vunpack.c.l.b16 %v321
        %v354 = vunpack.c.l.b16 %v322
        %v355 = vunpack.c.l.b16 %v323
        %v356 = vunpack.c.l.b16 %v324
        %v357 = vunpack.c.l.b16 %v325
        %v358 = vunpack.c.l.b16 %v326
        %v359 = vunpack.c.l.b16 %v327
        %v360 = vunpack.c.l.b16 %v328
        %v361 = vunpack.c.l.b16 %v329
        %v362 = vpack.c.b16 %v347, %v346
        %v363 = vpack.c.b16 %v349, %v348
        %v364 = vpack.c.b16 %v351, %v350
        %v365 = vpack.c.b16 %v353, %v352
        %v366 = vpack.c.b16 %v355, %v354
        %v367 = vpack.c.b16 %v357, %v356
        %v368 = vpack.c.b16 %v359, %v358
        %v369 = vpack.c.b16 %v361, %v360
        %378 = vmatprep.subr.bf16.mxu0 0
        %379 = vmatpush1.bf16.msra.mxu0 %v369
        %380 = vmatprep.subr.bf16.mxu0 0
        %381 = vmatpush1.bf16.msra.mxu0 %v368
        %382 = vmatprep.subr.bf16.mxu0 0
        %383 = vmatpush1.bf16.msra.mxu0 %v367
        %384 = vmatprep.subr.bf16.mxu0 0
        %385 = vmatpush1.bf16.msra.mxu0 %v366
        %386 = vmatprep.subr.bf16.mxu0 0
        %387 = vmatpush1.bf16.msra.mxu0 %v365
        %388 = vmatprep.subr.bf16.mxu0 0
        %389 = vmatpush1.bf16.msra.mxu0 %v364
        %390 = vmatprep.subr.bf16.mxu0 0
        %391 = vmatpush1.bf16.msra.mxu0 %v363
        %392 = vmatprep.subr.bf16.mxu0 0
        %393 = vmatpush1.bf16.msra.mxu0 %v362
        %394 = vmatprep.subr.bf16.mxu0 0
        %395 = vmatpush2.bf16.msra.mxu0 0
        %396 = vmatprep.subr.bf16.mxu0 0
        %397 = vmatpush2.bf16.msra.mxu0 0
        %398 = vmatprep.subr.bf16.mxu0 0
        %399 = vmatpush2.bf16.msra.mxu0 0
        %400 = vmatprep.subr.bf16.mxu0 0
        %401 = vmatpush2.bf16.msra.mxu0 0
        %402 = vmatprep.subr.bf16.mxu0 0
        %403 = vmatpush2.bf16.msra.mxu0 0
        %404 = vmatprep.subr.bf16.mxu0 0
        %405 = vmatpush2.bf16.msra.mxu0 0
        %406 = vmatprep.subr.bf16.mxu0 0
        %407 = vmatpush2.bf16.msra.mxu0 0
        %408 = vmatprep.subr.bf16.mxu0 0
        %409 = vmatpush2.bf16.msra.mxu0 0
        %410 = vmatprep.mubr.bf16.mxu0 0
        %411 = vmatmul.mubr.bf16.gmra.mxu0 %v313
        %v412 = vpop.f32.mrf.mxu0
        %v413 = vadd.f32 0.0, %v412
        %v414 = vpop.f32.mrf.mxu0
        %v415 = vpop.f32.mrf.mxu0
        %v416 = vpop.f32.mrf.mxu0
        %417 = vdwg.mxu0
        %v418 = vmul.f32 %v413, %v312
        %v419 = vmul.f32 %v418, -1.0
        %420 = vst [vmem:[%s284] sm:$0xff] %v419
        %v421 = vld [vmem:[%s302] sm:$0xf]
        %v422 = vmul.f32 %v421, 0.5
        %v424 = vrot.slane %v422, 2
        %v426 = vsub.f32 %v421, %v424
        %v427 = vadd.f32 %v421, %v424
        %v428 = vsub.f32 %v427, %v426
        %v430 = vrot.slane %v428, 1
        %v432 = vmul.f32 %v428, %v430
        %v433 = vld [vmem:[%s298] sm:$0xff]
        %435 = vset.pattern.permute.xlu0 0
        %436 = vperm.xlu0 %435, %v433
        %v437 = vpop.permute.xlu0 %436
        %v439 = vlaneseq
        %v440 = vshrl.u32 %v439, 7
        %v441 = vsub.s32 0, %v440
        %v442 = vrot.slane %v421, %v441
        %v443 = vsub.f32 %v437, %v442
        %v444 = vand.u32 2147483647, %v443
        %445 = vset.pattern.permute.xlu0 1
        %446 = vperm.xlu0 %445, %v433
        %v447 = vpop.permute.xlu0 %446
        %v449 = vlaneseq
        %v450 = vshrl.u32 %v449, 7
        %v451 = vsub.s32 1, %v450
        %v452 = vrot.slane %v421, %v451
        %v453 = vsub.f32 %v447, %v452
        %v454 = vand.u32 2147483647, %v453
        %v455 = vadd.f32 %v444, %v454
        %456 = vset.pattern.permute.xlu0 2
        %457 = vperm.xlu0 %456, %v433
        %v458 = vpop.permute.xlu0 %457
        %v460 = vlaneseq
        %v461 = vshrl.u32 %v460, 7
        %v462 = vsub.s32 2, %v461
        %v463 = vrot.slane %v421, %v462
        %v464 = vsub.f32 %v458, %v463
        %v465 = vand.u32 2147483647, %v464
        %v466 = vadd.f32 %v455, %v465
        %467 = vset.pattern.permute.xlu0 3
        %468 = vperm.xlu0 %467, %v433
        %v469 = vpop.permute.xlu0 %468
        %v471 = vlaneseq
        %v472 = vshrl.u32 %v471, 7
        %v473 = vsub.s32 3, %v472
        %v474 = vrot.slane %v421, %v473
        %v475 = vsub.f32 %v469, %v474
        %v476 = vand.u32 2147483647, %v475
        %v477 = vadd.f32 %v466, %v476
        %v478 = vmul.f32 %v433, 0.5
        %480 = vrot.lane.b32.xlu0 %v478, 126
        %v481 = vpop.permute.xlu0 %480
        %v483 = vsub.f32 %v433, %v481
        %v484 = vadd.f32 %v433, %v481
        %v485 = vsub.f32 %v484, %v483
        %487 = vrot.lane.b32.xlu0 %v485, 127
        %v488 = vpop.permute.xlu0 %487
        %v490 = vmul.f32 %v485, %v488
        %492 = vset.pattern.permute.xlu0 0
        %493 = vperm.xlu0 %492, %v484
        %v494 = vpop.permute.xlu0 %493
        %v496 = vlaneseq
        %v497 = vshrl.u32 %v496, 7
        %v498 = vsub.s32 0, %v497
        %v499 = vrot.slane %v427, %v498
        %v500 = vmin.f32 %v494, %v499
        %502 = vset.pattern.permute.xlu0 0
        %503 = vperm.xlu0 %502, %v483
        %v504 = vpop.permute.xlu0 %503
        %v506 = vlaneseq
        %v507 = vshrl.u32 %v506, 7
        %v508 = vsub.s32 0, %v507
        %v509 = vrot.slane %v426, %v508
        %v510 = vmax.f32 %v504, %v509
        %v511 = vsub.f32 %v500, %v510
        %v512 = vmax.f32 %v511, 0.0
        %513 = vset.pattern.permute.xlu0 1
        %514 = vperm.xlu0 %513, %v484
        %v515 = vpop.permute.xlu0 %514
        %v517 = vlaneseq
        %v518 = vshrl.u32 %v517, 7
        %v519 = vsub.s32 1, %v518
        %v520 = vrot.slane %v427, %v519
        %v521 = vmin.f32 %v515, %v520
        %522 = vset.pattern.permute.xlu0 1
        %523 = vperm.xlu0 %522, %v483
        %v524 = vpop.permute.xlu0 %523
        %v526 = vlaneseq
        %v527 = vshrl.u32 %v526, 7
        %v528 = vsub.s32 1, %v527
        %v529 = vrot.slane %v426, %v528
        %v530 = vmax.f32 %v524, %v529
        %v531 = vsub.f32 %v521, %v530
        %v532 = vmax.f32 %v531, 0.0
        %v533 = vmul.f32 %v512, %v532
        %535 = vset.pattern.permute.xlu0 0
        %536 = vperm.xlu0 %535, %v490
        %v537 = vpop.permute.xlu0 %536
        %v539 = vlaneseq
        %v540 = vshrl.u32 %v539, 7
        %v541 = vsub.s32 0, %v540
        %v542 = vrot.slane %v432, %v541
        %v543 = vadd.f32 %v537, %v542
        %v544 = vsub.f32 %v543, %v533
        %v545 = vmax.f32 %v544, 1e-12
        %v546 = vrcp.pop %v545
        %v547 = vmul.f32 %v533, %v546
        %v548 = vmax.f32 %v494, %v499
        %v549 = vmin.f32 %v504, %v509
        %v550 = vsub.f32 %v548, %v549
        %v551 = vmax.f32 %v550, 0.0
        %v552 = vmax.f32 %v515, %v520
        %v553 = vmin.f32 %v524, %v529
        %v554 = vsub.f32 %v552, %v553
        %v555 = vmax.f32 %v554, 0.0
        %v556 = vmul.f32 %v551, %v555
        %v557 = vsub.f32 %v556, %v544
        %v558 = vmax.f32 %v556, 1e-12
        %v559 = vrcp.pop %v558
        %v560 = vmul.f32 %v557, %v559
        %v561 = vsub.f32 %v560, %v547
        %v562 = vld [vmem:[%s284] sm:$0xff]
        %v563 = vmul.f32 %v477, 5.0
        %v564 = vadd.f32 %v562, %v563
        %v565 = vmul.f32 %v561, 2.0
        %v566 = vadd.f32 %v564, %v565
        %567 = vst [vmem:[%s284] sm:$0xff] %v566
        %s568 = sand.u32 %s151, 1
        %s569 = scalar_lea.sflag [#allocation4], %s568
        %s570 = sand.u32 %s151, 1
        %s571 = smul.addr %s570, 8
        %s572 = scalar_lea.vmem [#allocation5], %s571
        // Predicated region
        $region41: #{tpu_custom_call.1} parent=35 // pred_check
          %p573 = pneg %p161
        $region42: #{tpu_custom_call.1} parent=35 // pred_check_branch
          %575 = sbr.rel (%p573) target = $region44
        $region43: #{tpu_custom_call.1} parent=35 // pred_region
          %s577 = ssub.s32 128, 128
          %578 = vsyncadd %s569, %s577
          %s579 = sadd.s32 %s26, %s25
          %s580 = smul.addr %s579, 128
          %s581 = scalar_lea.hbm %s4, %s580
          %s583 = sshll.u32 %s572, 4
          %s584 = int_to_ptr.vmem [resolvable:$true] %s583
          %586 = dma.vmem_to_hbm [thread:$0]  %s584, 128, %s581, %s569
        $region44: #{tpu_custom_call.1} parent=35 // pred_fallthru
          _
      $region36: #{tpu_custom_call.1} parent=5 // pred_fallthru
        _
      %p587 = scmp.le.s32.totalorder 2, %s16
      // Predicated region
      $region45: #{tpu_custom_call.1} parent=5 // pred_check
        %p588 = pneg %p587
      $region46: #{tpu_custom_call.1} parent=5 // pred_check_branch
        %590 = sbr.rel (%p588) target = $region48
      $region47: #{tpu_custom_call.1} parent=5 // pred_region
        %s591 = ssub.s32 %s16, 2
        // Predicated region
        $region49: #{tpu_custom_call.1} parent=47 // pred_check
          %p592 = pneg %p167
        $region50: #{tpu_custom_call.1} parent=47 // pred_check_branch
          %594 = sbr.rel (%p592) target = $region52
        $region51: #{tpu_custom_call.1} parent=47 // pred_region
          %s595 = sand.u32 %s152, 1
          %s596 = scalar_lea.sflag [#allocation4], %s595
          %s597 = sand.u32 %s152, 1
          %s598 = smul.addr %s597, 8
          %s599 = scalar_lea.vmem [#allocation5], %s598
          %600 = dma.done %s596, 128
        $region52: #{tpu_custom_call.1} parent=47 // pred_fallthru
          _
      $region48: #{tpu_custom_call.1} parent=5 // pred_fallthru
        _
    $region6: #{tpu_custom_call.1} parent=1 // loop_footer
      %s20 = sadd.s32 1, %s16
    $region7: #{tpu_custom_call.1} parent=1 // loop_footer_branch
      %15 = sbr.rel target = $region3
    $region8: #{tpu_custom_call.1} parent=1 // loop_exit
      _
    %601 = vsyncpa [#allocation3], 1
    %s602 = scalar_lea.sflag [#allocation3], 1
    %603 = vsyncpa %s602, 1
    %604 = vsyncpa [#allocation4], 1
    %s605 = scalar_lea.sflag [#allocation4], 1
    %606 = vsyncpa %s605, 1

</llo_original>
